<compile_context>
chip_gen: v6e
topology: v6e:2x2x1
jax: 0.10.0
libtpu: 0.0.40
codegen_flags: <defaults>
</compile_context>

<pallas_src>
import jax
import jax.numpy as jnp
from jax.experimental import pallas as pl
from jax.experimental.pallas import tpu as pltpu


# Default batch tile: 128K rows * 8 feats * 4 B = 4 MiB/buffer (8 MiB double-
# buffered) -> ~4.7 us of HBM traffic per step, well past the ~0.35 us per-step
# overhead, and fits comfortably in the 32 MiB scoped VMEM on every generation.
_DEFAULT_BLOCK_ROWS = 131072


def _mlp_kernel(x_ref, w1_ref, b1_ref, w2_ref, b2_ref, w3_ref, b3_ref, o_ref):
    # Layer 1: (TB, 8) @ (8, 6) -> MXU, f32 accumulate.
    x = x_ref[...]
    h1 = jax.nn.sigmoid(
        jnp.dot(x, w1_ref[...], preferred_element_type=jnp.float32) + b1_ref[...]
    )
    # Layer 2: (TB, 6) @ (6, 4) -> MXU.
    h2 = jax.nn.sigmoid(
        jnp.dot(h1, w2_ref[...], preferred_element_type=jnp.float32) + b2_ref[...]
    )
    # Layer 3: K=4, N=1. A 1-column MXU matmul wastes a full 128-wide push per
    # 8 rows; do it on the VPU/XLU instead: elementwise mul + lane reduce.
    # w3_ref is passed pre-transposed as a (1, 4) row.
    logits = jnp.sum(h2 * w3_ref[...], axis=-1, keepdims=True) + b3_ref[...]
    o_ref[...] = jax.nn.sigmoid(logits).astype(o_ref.dtype)


def mlp_forward(x, w1, b1, w2, b2, w3, b3, *, block_rows=_DEFAULT_BLOCK_ROWS):
    """x: (N, 8) f32. Weights as (in, out); biases as (1, out)."""
    n, d = x.shape
    assert d == 8, f"expected feature dim 8, got {d}"

    # Batch tile: multiple of 8 (sublane), clamped to the (padded) batch size.
    n_pad8 = ((n + 7) // 8) * 8
    tb = min(block_rows, n_pad8)
    # Pad the batch so the grid divides evenly; padded rows are dropped below.
    n_padded = pl.cdiv(n_pad8, tb) * tb
    if n_padded != n:
        x = jnp.pad(x, ((0, n_padded - n), (0, 0)))

    # Last layer weight as a (1, 4) row so the kernel's broadcast-mul/reduce
    # needs no in-kernel transpose.
    w3_row = jnp.transpose(w3)  # (4, 1) -> (1, 4)

    grid = (n_padded // tb,)

    # Weights/biases: full-array blocks with constant index maps -> fetched
    # once, resident in VMEM across all grid steps.
    def resident(a):
        return pl.BlockSpec(a.shape, lambda i: tuple(0 for _ in a.shape))

    out = pl.pallas_call(
        _mlp_kernel,
        out_shape=jax.ShapeDtypeStruct((n_padded, 1), jnp.float32),
        grid=grid,
        in_specs=[
            pl.BlockSpec((tb, 8), lambda i: (i, 0)),   # x: streamed batch tiles
            resident(w1), resident(b1),
            resident(w2), resident(b2),
            resident(w3_row), resident(b3),
        ],
        out_specs=pl.BlockSpec((tb, 1), lambda i: (i, 0)),
        compiler_params=pltpu.CompilerParams(
            dimension_semantics=("parallel",),          # megacore on v7x
            vmem_limit_bytes=32 * 1024 * 1024,          # fits v5e/v6e/v7x
        ),
    )(x, w1, b1, w2, b2, w3_row, b3)

    return out[:n] if n_padded != n else out


def init_params(key):
    """Deterministic init matching torch.nn.Linear shapes (stored as (in, out))."""
    ks = jax.random.split(key, 6)

    def linear(kw, kb, fan_in, fan_out):
        bound = 1.0 / jnp.sqrt(fan_in)
        # torch weight is (out, in); we store the transpose (in, out).
        w = jax.random.uniform(kw, (fan_in, fan_out), jnp.float32, -bound, bound)
        b = jax.random.uniform(kb, (1, fan_out), jnp.float32, -bound, bound)
        return w, b

    w1, b1 = linear(ks[0], ks[1], 8, 6)
    w2, b2 = linear(ks[2], ks[3], 6, 4)
    w3, b3 = linear(ks[4], ks[5], 4, 1)
    return w1, b1, w2, b2, w3, b3


def _reference(x, params):
    w1, b1, w2, b2, w3, b3 = params
    return jax.nn.sigmoid(
        jax.nn.sigmoid(jax.nn.sigmoid(x @ w1 + b1) @ w2 + b2) @ w3 + b3
    )


if __name__ == "__main__":
    key = jax.random.PRNGKey(0)
    k_x, k_x2, k_p = jax.random.split(key, 3)
    params = init_params(k_p)

    # Small sanity-check shapes (perf regime is N >= ~1M rows; see review).
    batch = 8
    x = jax.random.normal(k_x, (batch, 8), dtype=jnp.float32)
    y = mlp_forward(x, *params)
    jax.block_until_ready(y)
    assert y.shape == (batch, 1)
    assert jnp.allclose(y, _reference(x, params), atol=1e-5, rtol=1e-5)

    # Also exercise the batch-padding path (N not a multiple of 8).
    batch2 = 13
    x2 = jax.random.normal(k_x2, (batch2, 8), dtype=jnp.float32)
    y2 = mlp_forward(x2, *params)
    jax.block_until_ready(y2)
    assert y2.shape == (batch2, 1)
    assert jnp.allclose(y2, _reference(x2, params), atol=1e-5, rtol=1e-5)

    print("KERNEL_OK")
</pallas_src>

<mosaic_0001>
module attributes {stable_mosaic.version = 11 : i64} {
  func.func @_mlp_kernel(%arg0: i32, %arg1: memref<8x8xf32, #tpu.memory_space<vmem>>, %arg2: memref<8x6xf32, #tpu.memory_space<vmem>>, %arg3: memref<1x6xf32, #tpu.memory_space<vmem>>, %arg4: memref<6x4xf32, #tpu.memory_space<vmem>>, %arg5: memref<1x4xf32, #tpu.memory_space<vmem>>, %arg6: memref<1x4xf32, #tpu.memory_space<vmem>>, %arg7: memref<1x1xf32, #tpu.memory_space<vmem>>, %arg8: memref<8x1xf32, #tpu.memory_space<vmem>>) attributes {dimension_semantics = [#tpu.dimension_semantics<parallel>], iteration_bounds = array<i64: 1>, scalar_prefetch = 0 : i64, scratch_operands = 0 : i64, tpu.core_type = #tpu.core_type<tc>, window_params = [{transform_indices = @transform_0, window_bounds = array<i64: 8, 8>}, {pipeline_mode = #tpu.pipeline_mode<synchronous>, transform_indices = @transform_1, window_bounds = array<i64: 8, 6>}, {pipeline_mode = #tpu.pipeline_mode<synchronous>, transform_indices = @transform_2, window_bounds = array<i64: 1, 6>}, {pipeline_mode = #tpu.pipeline_mode<synchronous>, transform_indices = @transform_3, window_bounds = array<i64: 6, 4>}, {pipeline_mode = #tpu.pipeline_mode<synchronous>, transform_indices = @transform_4, window_bounds = array<i64: 1, 4>}, {pipeline_mode = #tpu.pipeline_mode<synchronous>, transform_indices = @transform_5, window_bounds = array<i64: 1, 4>}, {pipeline_mode = #tpu.pipeline_mode<synchronous>, transform_indices = @transform_6, window_bounds = array<i64: 1, 1>}, {transform_indices = @transform_7, window_bounds = array<i64: 8, 1>}]} {
    %c0 = arith.constant 0 : index
    %c0_0 = arith.constant 0 : index
    %0 = vector.load %arg1[%c0, %c0_0] : memref<8x8xf32, #tpu.memory_space<vmem>>, vector<8x8xf32>
    %c0_1 = arith.constant 0 : index
    %c0_2 = arith.constant 0 : index
    %1 = vector.load %arg2[%c0_1, %c0_2] : memref<8x6xf32, #tpu.memory_space<vmem>>, vector<8x6xf32>
    %cst = arith.constant dense<0.000000e+00> : vector<8x6xf32>
    %2 = tpu.matmul %0, %1, %cst {dimension_numbers = #tpu.dot_dimension_numbers<[1], [0], [0], [1], [0, 0, 1, 1], [], []>} : vector<8x8xf32>, vector<8x6xf32>, vector<8x6xf32> -> vector<8x6xf32>
    %c0_3 = arith.constant 0 : index
    %c0_4 = arith.constant 0 : index
    %3 = vector.load %arg3[%c0_3, %c0_4] : memref<1x6xf32, #tpu.memory_space<vmem>>, vector<1x6xf32>
    %4 = vector.broadcast %3 : vector<1x6xf32> to vector<8x6xf32>
    %5 = arith.addf %2, %4 : vector<8x6xf32>
    %6 = arith.negf %5 : vector<8x6xf32>
    %7 = math.exp %6 : vector<8x6xf32>
    %cst_5 = arith.constant 1.000000e+00 : f32
    %8 = vector.broadcast %cst_5 : f32 to vector<8x6xf32>
    %9 = arith.addf %8, %7 : vector<8x6xf32>
    %10 = arith.divf %8, %9 : vector<8x6xf32>
    %c0_6 = arith.constant 0 : index
    %c0_7 = arith.constant 0 : index
    %11 = vector.load %arg4[%c0_6, %c0_7] : memref<6x4xf32, #tpu.memory_space<vmem>>, vector<6x4xf32>
    %cst_8 = arith.constant dense<0.000000e+00> : vector<8x4xf32>
    %12 = tpu.matmul %10, %11, %cst_8 {dimension_numbers = #tpu.dot_dimension_numbers<[1], [0], [0], [1], [0, 0, 1, 1], [], []>} : vector<8x6xf32>, vector<6x4xf32>, vector<8x4xf32> -> vector<8x4xf32>
    %c0_9 = arith.constant 0 : index
    %c0_10 = arith.constant 0 : index
    %13 = vector.load %arg5[%c0_9, %c0_10] : memref<1x4xf32, #tpu.memory_space<vmem>>, vector<1x4xf32>
    %14 = vector.broadcast %13 : vector<1x4xf32> to vector<8x4xf32>
    %15 = arith.addf %12, %14 : vector<8x4xf32>
    %16 = arith.negf %15 : vector<8x4xf32>
    %17 = math.exp %16 : vector<8x4xf32>
    %cst_11 = arith.constant 1.000000e+00 : f32
    %18 = vector.broadcast %cst_11 : f32 to vector<8x4xf32>
    %19 = arith.addf %18, %17 : vector<8x4xf32>
    %20 = arith.divf %18, %19 : vector<8x4xf32>
    %c0_12 = arith.constant 0 : index
    %c0_13 = arith.constant 0 : index
    %21 = vector.load %arg6[%c0_12, %c0_13] : memref<1x4xf32, #tpu.memory_space<vmem>>, vector<1x4xf32>
    %22 = vector.broadcast %21 : vector<1x4xf32> to vector<8x4xf32>
    %23 = arith.mulf %20, %22 : vector<8x4xf32>
    %cst_14 = arith.constant dense<0.000000e+00> : vector<8xf32>
    %24 = vector.multi_reduction <add>, %23, %cst_14 [1] : vector<8x4xf32> to vector<8xf32>
    %25 = vector.shape_cast %24 : vector<8xf32> to vector<8x1xf32>
    %c0_15 = arith.constant 0 : index
    %c0_16 = arith.constant 0 : index
    %26 = vector.load %arg7[%c0_15, %c0_16] : memref<1x1xf32, #tpu.memory_space<vmem>>, vector<1x1xf32>
    %27 = vector.broadcast %26 : vector<1x1xf32> to vector<8x1xf32>
    %28 = arith.addf %25, %27 : vector<8x1xf32>
    %29 = arith.negf %28 : vector<8x1xf32>
    %30 = math.exp %29 : vector<8x1xf32>
    %cst_17 = arith.constant 1.000000e+00 : f32
    %31 = vector.broadcast %cst_17 : f32 to vector<8x1xf32>
    %32 = arith.addf %31, %30 : vector<8x1xf32>
    %33 = arith.divf %31, %32 : vector<8x1xf32>
    %c0_18 = arith.constant 0 : index
    %c0_19 = arith.constant 0 : index
    %34 = vector.load %arg8[%c0_18, %c0_19] : memref<8x1xf32, #tpu.memory_space<vmem>>, vector<8x1xf32>
    tpu.vector_store %arg8[%c0_18, %c0_19], %33 {strides = array<i32>} : memref<8x1xf32, #tpu.memory_space<vmem>>, vector<8x1xf32>,
    return
  }
  func.func @transform_0(%arg0: i32) -> (i32, i32) {
    %c0_i32 = arith.constant 0 : i32
    %c0_i32_0 = arith.constant 0 : i32
    return %arg0, %c0_i32 : i32, i32
  }
  func.func @transform_1(%arg0: i32) -> (i32, i32) {
    %c0_i32 = arith.constant 0 : i32
    %c0_i32_0 = arith.constant 0 : i32
    %c0_i32_1 = arith.constant 0 : i32
    return %c0_i32, %c0_i32_0 : i32, i32
  }
  func.func @transform_2(%arg0: i32) -> (i32, i32) {
    %c0_i32 = arith.constant 0 : i32
    %c0_i32_0 = arith.constant 0 : i32
    %c0_i32_1 = arith.constant 0 : i32
    return %c0_i32, %c0_i32_0 : i32, i32
  }
  func.func @transform_3(%arg0: i32) -> (i32, i32) {
    %c0_i32 = arith.constant 0 : i32
    %c0_i32_0 = arith.constant 0 : i32
    %c0_i32_1 = arith.constant 0 : i32
    return %c0_i32, %c0_i32_0 : i32, i32
  }
  func.func @transform_4(%arg0: i32) -> (i32, i32) {
    %c0_i32 = arith.constant 0 : i32
    %c0_i32_0 = arith.constant 0 : i32
    %c0_i32_1 = arith.constant 0 : i32
    return %c0_i32, %c0_i32_0 : i32, i32
  }
  func.func @transform_5(%arg0: i32) -> (i32, i32) {
    %c0_i32 = arith.constant 0 : i32
    %c0_i32_0 = arith.constant 0 : i32
    %c0_i32_1 = arith.constant 0 : i32
    return %c0_i32, %c0_i32_0 : i32, i32
  }
  func.func @transform_6(%arg0: i32) -> (i32, i32) {
    %c0_i32 = arith.constant 0 : i32
    %c0_i32_0 = arith.constant 0 : i32
    %c0_i32_1 = arith.constant 0 : i32
    return %c0_i32, %c0_i32_0 : i32, i32
  }
  func.func @transform_7(%arg0: i32) -> (i32, i32) {
    %c0_i32 = arith.constant 0 : i32
    %c0_i32_0 = arith.constant 0 : i32
    return %arg0, %c0_i32 : i32, i32
  }
}

</mosaic_0001>

<llo_original>
// kernel: tpu_custom_call.1
$region0: #{tpu_custom_call.1}
  #allocation0 [shape = 'u32[]', space=smem, size = 0x4, offset = 0x4, fixed_abs, tag = 'smem constant byte address 0x4 - core index']
  #allocation1 [shape = 'u32[144,128]{1,0:T(1,128)}', space=vmem, size = 0x12000, scoped, tag = 'internal scratch']
  #allocation2 [shape = 'f32[1,1]{1,0:T(1,128)S(1)}', space=vmem, size = 0x200, scoped, tag = 'scoped memory for tpu_custom_call.1']
  %s0 = inlined_call_operand.vmem [shape: f32[8,8], index: 0, kind: input, shape index: {}]
  %s1 = inlined_call_operand.hbm [shape: f32[8,6], index: 1, kind: input, shape index: {}]
  %s2 = inlined_call_operand.vmem [shape: f32[1,6], index: 2, kind: input, shape index: {}]
  %s3 = inlined_call_operand.vmem [shape: f32[6,4], index: 3, kind: input, shape index: {}]
  %s4 = inlined_call_operand.vmem [shape: f32[1,4], index: 4, kind: input, shape index: {}]
  %s5 = inlined_call_operand.vmem [shape: f32[1,4], index: 5, kind: input, shape index: {}]
  %s6 = inlined_call_operand.<no memory space> [shape: f32[1,1], index: 6, kind: input, shape index: {}]
  %s7 = inlined_call_operand.vmem [shape: f32[8,1], index: 7, kind: output, shape index: {}]
  %s8 = sld [smem:[#allocation0]]
  $region42: #{tpu_custom_call.1} parent=0
    _
  %s10 = ssub.s32 1, %s8
  %s11 = scalar_select 0, %s10, %s8
  %v12 = vstv %s6
  %13 = vst [vmem:[#allocation2] sm:$0x1] %v12
  $region1: #{tpu_custom_call.1} parent=0
    #allocation3 [shape = 'u8[4096]{0}', space=vmem, size = 0x1000, scoped, tag = 'input window, operand 1, single buffered']
    #allocation4 [shape = 's32[1]{0}', space=sflag, size = 0x4, scoped, tag = 'scoped memory for tpu_custom_call.1']
    %14 = vsyncpa [#allocation4], 0
    // Predicated region
    $region2: #{tpu_custom_call.1} parent=1 // pred_check
      _
    $region3: #{tpu_custom_call.1} parent=1 // pred_check_branch
      %16 = sbr.rel (0) target = $region5
    $region4: #{tpu_custom_call.1} parent=1 // pred_region
      _
    $region5: #{tpu_custom_call.1} parent=1 // pred_fallthru
      _
    // Predicated region
    $region6: #{tpu_custom_call.1} parent=1 // pred_check
      _
    $region7: #{tpu_custom_call.1} parent=1 // pred_check_branch
      %18 = sbr.rel (0) target = $region9
    $region8: #{tpu_custom_call.1} parent=1 // pred_region
      %s20 = ssub.s32 128, 128
      %21 = vsyncadd [#allocation4], %s20
      %s23 = sshll.u32 [#allocation3], 4
      %s24 = int_to_ptr.vmem [resolvable:$true] %s23
      %26 = dma.hbm_to_vmem [thread:$0]  %s1, 128, %s24, [#allocation4]
    $region9: #{tpu_custom_call.1} parent=1 // pred_fallthru
      _
    // Predicated region
    $region10: #{tpu_custom_call.1} parent=1 // pred_check
      _
    $region11: #{tpu_custom_call.1} parent=1 // pred_check_branch
      %28 = sbr.rel (0) target = $region13
    $region12: #{tpu_custom_call.1} parent=1 // pred_region
      _
    $region13: #{tpu_custom_call.1} parent=1 // pred_fallthru
      _
    // Predicated region
    $region14: #{tpu_custom_call.1} parent=1 // pred_check
      _
    $region15: #{tpu_custom_call.1} parent=1 // pred_check_branch
      %30 = sbr.rel (0) target = $region17
    $region16: #{tpu_custom_call.1} parent=1 // pred_region
      _
    $region17: #{tpu_custom_call.1} parent=1 // pred_fallthru
      _
    // Predicated region
    $region18: #{tpu_custom_call.1} parent=1 // pred_check
      _
    $region19: #{tpu_custom_call.1} parent=1 // pred_check_branch
      %32 = sbr.rel (0) target = $region21
    $region20: #{tpu_custom_call.1} parent=1 // pred_region
      _
    $region21: #{tpu_custom_call.1} parent=1 // pred_fallthru
      _
    // Predicated region
    $region22: #{tpu_custom_call.1} parent=1 // pred_check
      _
    $region23: #{tpu_custom_call.1} parent=1 // pred_check_branch
      %34 = sbr.rel (0) target = $region25
    $region24: #{tpu_custom_call.1} parent=1 // pred_region
      _
    $region25: #{tpu_custom_call.1} parent=1 // pred_fallthru
      _
    // Predicated region
    $region26: #{tpu_custom_call.1} parent=1 // pred_check
      _
    $region27: #{tpu_custom_call.1} parent=1 // pred_check_branch
      %36 = sbr.rel (0) target = $region29
    $region28: #{tpu_custom_call.1} parent=1 // pred_region
      _
    $region29: #{tpu_custom_call.1} parent=1 // pred_fallthru
      _
    // Predicated region
    $region30: #{tpu_custom_call.1} parent=1 // pred_check
      _
    $region31: #{tpu_custom_call.1} parent=1 // pred_check_branch
      %38 = sbr.rel (0) target = $region33
    $region32: #{tpu_custom_call.1} parent=1 // pred_region
      %39 = dma.done [#allocation4], 128
    $region33: #{tpu_custom_call.1} parent=1 // pred_fallthru
      _
    %v40 = vld [vmem:[%s0] sm:$0xff]
    %v41 = vld [vmem:[#allocation3] sm:$0xff]
    %v42 = vld [vmem:[%s2] sm:$0x1]
    %v44 = vlaneseq
    %v45 = vshrl.u32 %v44, 7
    %v46 = vsub.s32 0, %v45
    %v47 = vrot.slane %v42, %v46
    %vm49 = vcmask 64512
    %v51 = vsel %vm49, %v40, 0
    %53 = vmatprep.subr.mxu0 0.0
    %54 = vmatpush1.msra.mxu0 0.0
    %55 = vmatprep.subr.mxu0 0.0
    %56 = vmatpush1.msra.mxu0 0.0
    %57 = vmatprep.subr.mxu0 0.0
    %58 = vmatpush1.msra.mxu0 0.0
    %59 = vmatprep.subr.mxu0 0.0
    %60 = vmatpush1.msra.mxu0 0.0
    %61 = vmatprep.subr.mxu0 0.0
    %62 = vmatpush1.msra.mxu0 0.0
    %63 = vmatprep.subr.mxu0 0.0
    %64 = vmatpush1.msra.mxu0 0.0
    %65 = vmatprep.subr.mxu0 0.0
    %66 = vmatpush1.msra.mxu0 0.0
    %67 = vmatprep.subr.mxu0 0.0
    %68 = vmatpush1.msra.mxu0 0.0
    %69 = vmatprep.subr.mxu0 0.0
    %70 = vmatpush1.msra.mxu0 0.0
    %71 = vmatprep.subr.mxu0 0.0
    %72 = vmatpush1.msra.mxu0 0.0
    %73 = vmatprep.subr.mxu0 0.0
    %74 = vmatpush1.msra.mxu0 0.0
    %75 = vmatprep.subr.mxu0 0.0
    %76 = vmatpush1.msra.mxu0 0.0
    %77 = vmatprep.subr.mxu0 0.0
    %78 = vmatpush1.msra.mxu0 0.0
    %79 = vmatprep.subr.mxu0 0.0
    %80 = vmatpush1.msra.mxu0 0.0
    %81 = vmatprep.subr.mxu0 0.0
    %82 = vmatpush1.msra.mxu0 0.0
    %83 = vmatprep.subr.mxu0 0.0
    %84 = vmatpush1.msra.mxu0 %v41
    %85 = vmatprep.subr.mxu0 0.0
    %86 = vmatpush2.msra.mxu0 0.0
    %87 = vmatprep.subr.mxu0 0.0
    %88 = vmatpush2.msra.mxu0 0.0
    %89 = vmatprep.subr.mxu0 0.0
    %90 = vmatpush2.msra.mxu0 0.0
    %91 = vmatprep.subr.mxu0 0.0
    %92 = vmatpush2.msra.mxu0 0.0
    %93 = vmatprep.subr.mxu0 0.0
    %94 = vmatpush2.msra.mxu0 0.0
    %95 = vmatprep.subr.mxu0 0.0
    %96 = vmatpush2.msra.mxu0 0.0
    %97 = vmatprep.subr.mxu0 0.0
    %98 = vmatpush2.msra.mxu0 0.0
    %99 = vmatprep.subr.mxu0 0.0
    %100 = vmatpush2.msra.mxu0 0.0
    %101 = vmatprep.subr.mxu0 0.0
    %102 = vmatpush2.msra.mxu0 0.0
    %103 = vmatprep.subr.mxu0 0.0
    %104 = vmatpush2.msra.mxu0 0.0
    %105 = vmatprep.subr.mxu0 0.0
    %106 = vmatpush2.msra.mxu0 0.0
    %107 = vmatprep.subr.mxu0 0.0
    %108 = vmatpush2.msra.mxu0 0.0
    %109 = vmatprep.subr.mxu0 0.0
    %110 = vmatpush2.msra.mxu0 0.0
    %111 = vmatprep.subr.mxu0 0.0
    %112 = vmatpush2.msra.mxu0 0.0
    %113 = vmatprep.subr.mxu0 0.0
    %114 = vmatpush2.msra.mxu0 0.0
    %115 = vmatprep.subr.mxu0 0.0
    %116 = vmatpush2.msra.mxu0 0.0
    %117 = vmatprep.mubr.f32.mxu0 0.0
    %118 = vmatmul.mubr.f32.gmra.mxu0 %v51
    %v119 = vpop.f32.mrf.mxu0
    %v120 = vadd.f32 %v47, %v119
    %v121 = vpop.f32.mrf.mxu0
    %122 = vdwg.mxu0
    %v123 = vxor.u32 %v120, 2147483648
    %v124 = vmul.f32 %v123, 1.442695
    %v125 = vpow.pop %v124
    %v126 = vadd.f32 %v125, 1.0
    %v127 = vrcp.pop %v126
    %v128 = vmul.f32 1.0, %v127
    %v129 = vld [vmem:[%s3] sm:$0x3f]
    %v130 = vld [vmem:[%s4] sm:$0x1]
    %v132 = vlaneseq
    %v133 = vshrl.u32 %v132, 7
    %v134 = vsub.s32 0, %v133
    %v135 = vrot.slane %v130, %v134
    %vm137 = vcmask 48128
    %v139 = vsel %vm137, %v128, 0
    %vm141 = vcmask 1045504
    %v143 = vsel %vm141, %v129, 0
    %145 = vmatprep.subr.mxu0 0.0
    %146 = vmatpush1.msra.mxu0 0.0
    %147 = vmatprep.subr.mxu0 0.0
    %148 = vmatpush1.msra.mxu0 0.0
    %149 = vmatprep.subr.mxu0 0.0
    %150 = vmatpush1.msra.mxu0 0.0
    %151 = vmatprep.subr.mxu0 0.0
    %152 = vmatpush1.msra.mxu0 0.0
    %153 = vmatprep.subr.mxu0 0.0
    %154 = vmatpush1.msra.mxu0 0.0
    %155 = vmatprep.subr.mxu0 0.0
    %156 = vmatpush1.msra.mxu0 0.0
    %157 = vmatprep.subr.mxu0 0.0
    %158 = vmatpush1.msra.mxu0 0.0
    %159 = vmatprep.subr.mxu0 0.0
    %160 = vmatpush1.msra.mxu0 0.0
    %161 = vmatprep.subr.mxu0 0.0
    %162 = vmatpush1.msra.mxu0 0.0
    %163 = vmatprep.subr.mxu0 0.0
    %164 = vmatpush1.msra.mxu0 0.0
    %165 = vmatprep.subr.mxu0 0.0
    %166 = vmatpush1.msra.mxu0 0.0
    %167 = vmatprep.subr.mxu0 0.0
    %168 = vmatpush1.msra.mxu0 0.0
    %169 = vmatprep.subr.mxu0 0.0
    %170 = vmatpush1.msra.mxu0 0.0
    %171 = vmatprep.subr.mxu0 0.0
    %172 = vmatpush1.msra.mxu0 0.0
    %173 = vmatprep.subr.mxu0 0.0
    %174 = vmatpush1.msra.mxu0 0.0
    %175 = vmatprep.subr.mxu0 0.0
    %176 = vmatpush1.msra.mxu0 %v143
    %177 = vmatprep.subr.mxu0 0.0
    %178 = vmatpush2.msra.mxu0 0.0
    %179 = vmatprep.subr.mxu0 0.0
    %180 = vmatpush2.msra.mxu0 0.0
    %181 = vmatprep.subr.mxu0 0.0
    %182 = vmatpush2.msra.mxu0 0.0
    %183 = vmatprep.subr.mxu0 0.0
    %184 = vmatpush2.msra.mxu0 0.0
    %185 = vmatprep.subr.mxu0 0.0
    %186 = vmatpush2.msra.mxu0 0.0
    %187 = vmatprep.subr.mxu0 0.0
    %188 = vmatpush2.msra.mxu0 0.0
    %189 = vmatprep.subr.mxu0 0.0
    %190 = vmatpush2.msra.mxu0 0.0
    %191 = vmatprep.subr.mxu0 0.0
    %192 = vmatpush2.msra.mxu0 0.0
    %193 = vmatprep.subr.mxu0 0.0
    %194 = vmatpush2.msra.mxu0 0.0
    %195 = vmatprep.subr.mxu0 0.0
    %196 = vmatpush2.msra.mxu0 0.0
    %197 = vmatprep.subr.mxu0 0.0
    %198 = vmatpush2.msra.mxu0 0.0
    %199 = vmatprep.subr.mxu0 0.0
    %200 = vmatpush2.msra.mxu0 0.0
    %201 = vmatprep.subr.mxu0 0.0
    %202 = vmatpush2.msra.mxu0 0.0
    %203 = vmatprep.subr.mxu0 0.0
    %204 = vmatpush2.msra.mxu0 0.0
    %205 = vmatprep.subr.mxu0 0.0
    %206 = vmatpush2.msra.mxu0 0.0
    %207 = vmatprep.subr.mxu0 0.0
    %208 = vmatpush2.msra.mxu0 0.0
    %209 = vmatprep.mubr.f32.mxu0 0.0
    %210 = vmatmul.mubr.f32.gmra.mxu0 %v139
    %v211 = vpop.f32.mrf.mxu0
    %v212 = vadd.f32 %v135, %v211
    %v213 = vpop.f32.mrf.mxu0
    %214 = vdwg.mxu0
    %v215 = vxor.u32 %v212, 2147483648
    %v216 = vmul.f32 %v215, 1.442695
    %v217 = vpow.pop %v216
    %v218 = vadd.f32 %v217, 1.0
    %v219 = vrcp.pop %v218
    %v220 = vmul.f32 1.0, %v219
    %v221 = vld [vmem:[%s5] sm:$0x1]
    %v223 = vlaneseq
    %v224 = vshrl.u32 %v223, 7
    %v225 = vsub.s32 0, %v224
    %v226 = vrot.slane %v221, %v225
    %v228 = vmul.f32 %v220, %v226
    %vm229 = vcmask 31744
    %v230 = vsel %vm229, %v228, 0.0
    %231 = vadd.xlane.f32.xlu0 %v230
    %v232 = vpop.xlane.xlu0 %231
    %v233 = vld [vmem:[#allocation2] sm:$0x1]
    %v235 = vlaneseq
    %v236 = vshrl.u32 %v235, 7
    %v237 = vsub.s32 0, %v236
    %v238 = vrot.slane %v233, %v237
    %v240 = vadd.f32 %v232, %v238
    %v241 = vxor.u32 %v240, 2147483648
    %v242 = vmul.f32 %v241, 1.442695
    %v243 = vpow.pop %v242
    %v244 = vadd.f32 %v243, 1.0
    %v245 = vrcp.pop %v244
    %v246 = vmul.f32 1.0, %v245
    %vm247 = vcmask 7168
    %248 = vst.msk [vmem:[%s7] sm:$0xff] %vm247, %v246
    // Predicated region
    $region34: #{tpu_custom_call.1} parent=1 // pred_check
      _
    $region35: #{tpu_custom_call.1} parent=1 // pred_check_branch
      %250 = sbr.rel (0) target = $region37
    $region36: #{tpu_custom_call.1} parent=1 // pred_region
      _
    $region37: #{tpu_custom_call.1} parent=1 // pred_fallthru
      _
    // Predicated region
    $region38: #{tpu_custom_call.1} parent=1 // pred_check
      _
    $region39: #{tpu_custom_call.1} parent=1 // pred_check_branch
      %252 = sbr.rel (0) target = $region41
    $region40: #{tpu_custom_call.1} parent=1 // pred_region
      _
    $region41: #{tpu_custom_call.1} parent=1 // pred_fallthru
      _
    %253 = vsyncpa [#allocation4], 1

</llo_original>
